<compile_context>
chip_gen: v5e
topology: v5e:2x2
jax: 0.10.0
libtpu: 0.0.40
codegen_flags: <defaults>
</compile_context>

<pallas_src>
import jax
import jax.numpy as jnp
from jax.experimental import pallas as pl
from jax.experimental.pallas import tpu as pltpu

# ---------------- model hyper-params (small, consistent with the module) -----
VOCAB = 128
EMB = 32
HID = 32
N_LAYERS = 2
BATCH = 8            # 8 sublanes -> fully aligned (8, 128) tiles

# ---------------- parameter-slab layout (rows of a (SLAB_ROWS, 6H) slab) -----
R_W0 = 0                        # layer-0 block-diag [[emb@Wih0^T + bias, 0|b_hn], [0, Whh0^T]]
R_W1 = R_W0 + VOCAB + HID       # layer-1 block-diag [[Wih1^T, 0], [0, Whh1^T]]
R_FCW = R_W1 + 2 * HID          # fc weight (H, V) in cols [0:V]
R_B1 = R_FCW + HID              # layer-1 packed bias row  [b_rz(2H) | b_in(H) | b_hn(H)]
R_FCB = R_B1 + 1                # fc bias row
SLAB_COLS = 6 * HID             # 192
SLAB_ROWS = ((R_FCB + 1 + 7) // 8) * 8   # 264 (pad sublanes to a multiple of 8)


# ---------------------------- Pallas kernel ----------------------------------
def gru_decoder_kernel(tok_ref, h0_ref, slab_ref, pred_ref, hn_ref):
    """One decode step per grid iteration; hidden state carried in hn_ref."""
    H = HID
    t = pl.program_id(0)

    # Initialize the resident hidden-state block from h_0 on the first step.
    @pl.when(t == 0)
    def _():
        hn_ref[...] = h0_ref[...]

    # --- parameters (VMEM-resident slab, static zero-cost slices) ------------
    w0 = slab_ref[R_W0:R_W1, :]               # (V+H, 6H)  layer-0 fused (bias folded)
    w1 = slab_ref[R_W1:R_FCW, :]              # (2H, 6H)   layer-1 fused
    fcw = slab_ref[R_FCW:R_B1, 0:VOCAB]       # (H, V)
    b1 = slab_ref[R_B1:R_B1 + 1, 0:4 * H]     # (1, 4H)
    fcb = slab_ref[R_FCB:R_FCB + 1, 0:VOCAB]  # (1, V)

    # --- in-kernel embedding lookup (folded into layer-0 weights) ------------
    tok = tok_ref[t]                                               # (B, 1) int32
    onehot = (jax.lax.broadcasted_iota(jnp.int32, (BATCH, VOCAB), 1)
              == tok).astype(jnp.float32)                          # (B, V)

    h_prev0 = hn_ref[0]                                            # (B, H)
    h_prev1 = hn_ref[1]                                            # (B, H)

    # layer 0: one fused MXU pass (embedding gather + gx + gh + all biases)
    in0 = jnp.concatenate([onehot, h_prev0], axis=1)               # (B, V+H)
    g0 = jnp.dot(in0, w0, preferred_element_type=jnp.float32)      # (B, 6H)
    rz0 = jax.nn.sigmoid(g0[:, 0:2 * H] + g0[:, 3 * H:5 * H])
    r0 = rz0[:, 0:H]
    z0 = rz0[:, H:2 * H]
    n0 = jnp.tanh(g0[:, 2 * H:3 * H] + r0 * g0[:, 5 * H:6 * H])
    h_new0 = (1.0 - z0) * n0 + z0 * h_prev0

    # layer 1: one fused MXU pass (inter-layer dropout is identity in eval)
    in1 = jnp.concatenate([h_new0, h_prev1], axis=1)               # (B, 2H)
    g1 = jnp.dot(in1, w1, preferred_element_type=jnp.float32)      # (B, 6H)
    rz1 = jax.nn.sigmoid(g1[:, 0:2 * H] + g1[:, 3 * H:5 * H] + b1[:, 0:2 * H])
    r1 = rz1[:, 0:H]
    z1 = rz1[:, H:2 * H]
    n1 = jnp.tanh(g1[:, 2 * H:3 * H] + b1[:, 2 * H:3 * H]
                  + r1 * (g1[:, 5 * H:6 * H] + b1[:, 3 * H:4 * H]))
    h_new1 = (1.0 - z1) * n1 + z1 * h_prev1

    # carried state (VMEM-resident output block; HBM writeback happens once)
    hn_ref[0] = h_new0
    hn_ref[1] = h_new1

    # fc head on the top-layer output (lane-dense (B, 128) store)
    pred_ref[...] = (jnp.dot(h_new1, fcw, preferred_element_type=jnp.float32)
                     + fcb)


# ------------------------------ wrappers --------------------------------------
def gru_decoder_decode(tokens_tb, h_0, slab):
    """tokens_tb: int32 (T, B); h_0: f32 (L, B, H) -> (pred (T,B,V), h_n (L,B,H))."""
    T = tokens_tb.shape[0]
    tokens = tokens_tb.reshape(T, BATCH, 1).astype(jnp.int32)

    pred, h_n = pl.pallas_call(
        gru_decoder_kernel,
        grid=(T,),
        in_specs=[
            # full token sequence, resident in VMEM (tiny), indexed per step
            pl.BlockSpec((T, BATCH, 1), lambda t: (0, 0, 0)),
            # initial hidden state: constant block -> loaded once
            pl.BlockSpec((N_LAYERS, BATCH, HID), lambda t: (0, 0, 0)),
            # packed parameter slab: constant block -> VMEM-resident across steps
            pl.BlockSpec((SLAB_ROWS, SLAB_COLS), lambda t: (0, 0)),
        ],
        out_specs=(
            # per-step logits
            pl.BlockSpec((None, BATCH, VOCAB), lambda t: (t, 0, 0)),
            # hidden state: constant block -> resident accumulator, 1 writeback
            pl.BlockSpec((N_LAYERS, BATCH, HID), lambda t: (0, 0, 0)),
        ),
        out_shape=(
            jax.ShapeDtypeStruct((T, BATCH, VOCAB), jnp.float32),
            jax.ShapeDtypeStruct((N_LAYERS, BATCH, HID), jnp.float32),
        ),
        compiler_params=pltpu.CompilerParams(
            dimension_semantics=("arbitrary",)),   # sequential carry over steps
    )(tokens, h_0, slab)
    return pred, h_n


def gru_decoder_forward(x_tokens, h_0, slab):
    """Module-equivalent single step: x (B,) int32, h_0 (L,B,H) -> (pred, h_n)."""
    pred_seq, h_n = gru_decoder_decode(x_tokens[None, :], h_0, slab)
    # h_n.squeeze(0) in PyTorch is a no-op for n_layers > 1.
    return pred_seq[0], h_n


# ------------------------ parameter init & packing ----------------------------
def init_params(key):
    """PyTorch-layout parameters (weight_ih: (3H, in), gate order r, z, n)."""
    ks = jax.random.split(key, 12)
    scale = 1.0 / jnp.sqrt(jnp.float32(HID))

    def u(k, shape):
        return jax.random.uniform(k, shape, jnp.float32, -scale, scale)

    return {
        "emb": jax.random.normal(ks[0], (VOCAB, EMB), jnp.float32) * 0.1,
        "wih_l0": u(ks[1], (3 * HID, EMB)),
        "whh_l0": u(ks[2], (3 * HID, HID)),
        "bih_l0": u(ks[3], (3 * HID,)),
        "bhh_l0": u(ks[4], (3 * HID,)),
        "wih_l1": u(ks[5], (3 * HID, HID)),
        "whh_l1": u(ks[6], (3 * HID, HID)),
        "bih_l1": u(ks[7], (3 * HID,)),
        "bhh_l1": u(ks[8], (3 * HID,)),
        "fc_w": u(ks[9], (VOCAB, HID)),
        "fc_b": u(ks[10], (VOCAB,)),
    }


def pack_params(p):
    """Pack everything into one (SLAB_ROWS, 6H) f32 slab (built once, reused)."""
    H, V = HID, VOCAB
    f32 = jnp.float32
    hp = jax.lax.Precision.HIGHEST

    # Layer 0: embedding folded into the input weights; since the one-hot row
    # sums to exactly 1, ALL layer-0 biases are folded into the top block too:
    #   cols 0:2H  <- b_ir+b_hr, b_iz+b_hz   (summed r/z biases)
    #   cols 2H:3H <- b_in
    #   cols 5H:6H <- b_hn                   (added to gh_n before the r* gate)
    gx0_w = jnp.dot(p["emb"], p["wih_l0"].T, precision=hp)          # (V, 3H)
    bias0 = jnp.concatenate([
        p["bih_l0"][:2 * H] + p["bhh_l0"][:2 * H],
        p["bih_l0"][2 * H:],
        jnp.zeros((2 * H,), f32),
        p["bhh_l0"][2 * H:],
    ])                                                              # (6H,)
    w0_top = jnp.concatenate([gx0_w, jnp.zeros((V, 3 * H), f32)], 1) + bias0[None, :]
    w0_bot = jnp.concatenate([jnp.zeros((H, 3 * H), f32), p["whh_l0"].T], 1)
    w0 = jnp.concatenate([w0_top, w0_bot], axis=0)                  # (V+H, 6H)

    # Layer 1 block-diagonal fused weight.
    w1_top = jnp.concatenate([p["wih_l1"].T, jnp.zeros((H, 3 * H), f32)], 1)
    w1_bot = jnp.concatenate([jnp.zeros((H, 3 * H), f32), p["whh_l1"].T], 1)
    w1 = jnp.concatenate([w1_top, w1_bot], axis=0)                  # (2H, 6H)

    lane_pad = 6 * H - V                                            # 192 - 128
    fcw_rows = jnp.concatenate([p["fc_w"].T, jnp.zeros((H, lane_pad), f32)], 1)

    b1_row = jnp.concatenate([
        p["bih_l1"][:2 * H] + p["bhh_l1"][:2 * H],                  # summed r/z
        p["bih_l1"][2 * H:],                                        # b_in
        p["bhh_l1"][2 * H:],                                        # b_hn
        jnp.zeros((6 * H - 4 * H,), f32),
    ])[None, :]                                                     # (1, 6H)
    fcb_row = jnp.concatenate([p["fc_b"], jnp.zeros((lane_pad,), f32)])[None, :]

    slab = jnp.concatenate([w0, w1, fcw_rows, b1_row, fcb_row], axis=0)  # (258, 192)
    slab = jnp.concatenate(
        [slab, jnp.zeros((SLAB_ROWS - slab.shape[0], 6 * H), f32)], axis=0)
    assert slab.shape == (SLAB_ROWS, SLAB_COLS)
    return slab


# --------------------------- pure-JAX reference --------------------------------
def reference_decode(tokens_tb, h_0, p):
    H = HID
    hp = jax.lax.Precision.HIGHEST

    def cell(x, h, wih, whh, bih, bhh):
        gx = jnp.dot(x, wih.T, precision=hp) + bih
        gh = jnp.dot(h, whh.T, precision=hp) + bhh
        r = jax.nn.sigmoid(gx[:, :H] + gh[:, :H])
        z = jax.nn.sigmoid(gx[:, H:2 * H] + gh[:, H:2 * H])
        n = jnp.tanh(gx[:, 2 * H:] + r * gh[:, 2 * H:])
        return (1.0 - z) * n + z * h

    h0, h1 = h_0[0], h_0[1]
    preds = []
    for t in range(tokens_tb.shape[0]):
        x = jnp.take(p["emb"], tokens_tb[t], axis=0)
        h0 = cell(x, h0, p["wih_l0"], p["whh_l0"], p["bih_l0"], p["bhh_l0"])
        h1 = cell(h0, h1, p["wih_l1"], p["whh_l1"], p["bih_l1"], p["bhh_l1"])
        preds.append(jnp.dot(h1, p["fc_w"].T, precision=hp) + p["fc_b"])
    return jnp.stack(preds, axis=0), jnp.stack([h0, h1], axis=0)


if __name__ == "__main__":
    key = jax.random.PRNGKey(0)
    k_p, k_x, k_h, k_seq = jax.random.split(key, 4)

    params = init_params(k_p)
    slab = pack_params(params)

    # --- single-step check: exact semantics of GRU_Decoder.forward -----------
    x_tokens = jax.random.randint(k_x, (BATCH,), 0, VOCAB, dtype=jnp.int32)
    h_0 = jax.random.normal(k_h, (N_LAYERS, BATCH, HID), jnp.float32)

    pred, h_n = gru_decoder_forward(x_tokens, h_0, slab)
    jax.block_until_ready((pred, h_n))

    pred_ref, h_n_ref = reference_decode(x_tokens[None, :], h_0, params)
    assert pred.shape == (BATCH, VOCAB) and h_n.shape == (N_LAYERS, BATCH, HID)
    assert jnp.allclose(pred, pred_ref[0], atol=1e-4, rtol=1e-4)
    assert jnp.allclose(h_n, h_n_ref, atol=1e-4, rtol=1e-4)

    # --- multi-step decode: T tokens in ONE kernel call (weights resident) ---
    T = 8
    tok_seq = jax.random.randint(k_seq, (T, BATCH), 0, VOCAB, dtype=jnp.int32)
    pred_seq, h_T = gru_decoder_decode(tok_seq, h_0, slab)
    jax.block_until_ready((pred_seq, h_T))

    pred_seq_ref, h_T_ref = reference_decode(tok_seq, h_0, params)
    assert jnp.allclose(pred_seq, pred_seq_ref, atol=1e-4, rtol=1e-4)
    assert jnp.allclose(h_T, h_T_ref, atol=1e-4, rtol=1e-4)

    print("KERNEL_OK")
</pallas_src>

<mosaic_0001>
module attributes {stable_mosaic.version = 11 : i64} {
  func.func @gru_decoder_kernel(%arg0: i32, %arg1: memref<1x8x1xi32, #tpu.memory_space<vmem>>, %arg2: memref<2x8x32xf32, #tpu.memory_space<vmem>>, %arg3: memref<264x192xf32, #tpu.memory_space<vmem>>, %arg4: memref<1x8x128xf32, #tpu.memory_space<vmem>>, %arg5: memref<2x8x32xf32, #tpu.memory_space<vmem>>) attributes {dimension_semantics = [#tpu.dimension_semantics<arbitrary>], iteration_bounds = array<i64: 1>, scalar_prefetch = 0 : i64, scratch_operands = 0 : i64, tpu.core_type = #tpu.core_type<tc>, window_params = [{pipeline_mode = #tpu.pipeline_mode<synchronous>, transform_indices = @transform_0, window_bounds = array<i64: 1, 8, 1>}, {pipeline_mode = #tpu.pipeline_mode<synchronous>, transform_indices = @transform_1, window_bounds = array<i64: 2, 8, 32>}, {pipeline_mode = #tpu.pipeline_mode<synchronous>, transform_indices = @transform_2, window_bounds = array<i64: 264, 192>}, {transform_indices = @transform_3, window_bounds = array<i64: 1, 8, 128>}, {pipeline_mode = #tpu.pipeline_mode<synchronous>, transform_indices = @transform_4, window_bounds = array<i64: 2, 8, 32>}]} {
    %c0_i32 = arith.constant 0 : i32
    %0 = arith.cmpi eq, %arg0, %c0_i32 : i32
    %1 = arith.extui %0 : i1 to i32
    %c0_i32_0 = arith.constant 0 : i32
    %2 = arith.cmpi ne, %1, %c0_i32_0 : i32
    scf.if %2 {
      %c0_28 = arith.constant 0 : index
      %c0_29 = arith.constant 0 : index
      %c0_30 = arith.constant 0 : index
      %85 = vector.load %arg2[%c0_28, %c0_29, %c0_30] : memref<2x8x32xf32, #tpu.memory_space<vmem>>, vector<2x8x32xf32>
      %c0_31 = arith.constant 0 : index
      %c0_32 = arith.constant 0 : index
      %c0_33 = arith.constant 0 : index
      %86 = vector.load %arg5[%c0_31, %c0_32, %c0_33] : memref<2x8x32xf32, #tpu.memory_space<vmem>>, vector<2x8x32xf32>
      tpu.vector_store %arg5[%c0_31, %c0_32, %c0_33], %85 {strides = array<i32>} : memref<2x8x32xf32, #tpu.memory_space<vmem>>, vector<2x8x32xf32>,
    } else {
    }
    %c0 = arith.constant 0 : index
    %c0_1 = arith.constant 0 : index
    %3 = vector.load %arg3[%c0, %c0_1] : memref<264x192xf32, #tpu.memory_space<vmem>>, vector<160x192xf32>
    %c160 = arith.constant 160 : index
    %c0_2 = arith.constant 0 : index
    %4 = vector.load %arg3[%c160, %c0_2] : memref<264x192xf32, #tpu.memory_space<vmem>>, vector<64x192xf32>
    %c224 = arith.constant 224 : index
    %c0_3 = arith.constant 0 : index
    %5 = vector.load %arg3[%c224, %c0_3] : memref<264x192xf32, #tpu.memory_space<vmem>>, vector<32x128xf32>
    %c256 = arith.constant 256 : index
    %c0_4 = arith.constant 0 : index
    %6 = vector.load %arg3[%c256, %c0_4] : memref<264x192xf32, #tpu.memory_space<vmem>>, vector<1x128xf32>
    %c257 = arith.constant 257 : index
    %c0_5 = arith.constant 0 : index
    %7 = vector.load %arg3[%c257, %c0_5] : memref<264x192xf32, #tpu.memory_space<vmem>>, vector<1x128xf32>
    %8 = arith.index_cast %arg0 : i32 to index
    %c0_6 = arith.constant 0 : index
    %c0_7 = arith.constant 0 : index
    %9 = vector.load %arg1[%8, %c0_6, %c0_7] : memref<1x8x1xi32, #tpu.memory_space<vmem>>, vector<1x8x1xi32>
    %10 = vector.shape_cast %9 : vector<1x8x1xi32> to vector<8x1xi32>
    %11 = tpu.iota {dimensions = array<i32: 1>} : vector<8x128xi32>
    %12 = vector.broadcast %10 : vector<8x1xi32> to vector<8x128xi32>
    %13 = arith.cmpi eq, %11, %12 : vector<8x128xi32>
    %14 = arith.extui %13 : vector<8x128xi1> to vector<8x128xi32>
    %15 = arith.sitofp %14 : vector<8x128xi32> to vector<8x128xf32>
    %c0_8 = arith.constant 0 : index
    %c0_9 = arith.constant 0 : index
    %c0_10 = arith.constant 0 : index
    %16 = vector.load %arg5[%c0_8, %c0_9, %c0_10] : memref<2x8x32xf32, #tpu.memory_space<vmem>>, vector<1x8x32xf32>
    %17 = vector.shape_cast %16 : vector<1x8x32xf32> to vector<8x32xf32>
    %c1 = arith.constant 1 : index
    %c0_11 = arith.constant 0 : index
    %c0_12 = arith.constant 0 : index
    %18 = vector.load %arg5[%c1, %c0_11, %c0_12] : memref<2x8x32xf32, #tpu.memory_space<vmem>>, vector<1x8x32xf32>
    %19 = vector.shape_cast %18 : vector<1x8x32xf32> to vector<8x32xf32>
    %20 = tpu.concatenate %15, %17 in 1 : vector<8x128xf32>, vector<8x32xf32> -> vector<8x160xf32>
    %cst = arith.constant dense<0.000000e+00> : vector<8x192xf32>
    %21 = tpu.matmul %20, %3, %cst {dimension_numbers = #tpu.dot_dimension_numbers<[1], [0], [0], [1], [0, 0, 1, 1], [], []>} : vector<8x160xf32>, vector<160x192xf32>, vector<8x192xf32> -> vector<8x192xf32>
    %22 = vector.extract_strided_slice %21 {offsets = [0, 0], sizes = [8, 64], strides = [1, 1]} : vector<8x192xf32> to vector<8x64xf32>
    %23 = vector.extract_strided_slice %21 {offsets = [0, 96], sizes = [8, 64], strides = [1, 1]} : vector<8x192xf32> to vector<8x64xf32>
    %24 = arith.addf %22, %23 : vector<8x64xf32>
    %25 = arith.negf %24 : vector<8x64xf32>
    %26 = math.exp %25 : vector<8x64xf32>
    %cst_13 = arith.constant 1.000000e+00 : f32
    %27 = vector.broadcast %cst_13 : f32 to vector<8x64xf32>
    %28 = arith.addf %27, %26 : vector<8x64xf32>
    %29 = arith.divf %27, %28 : vector<8x64xf32>
    %30 = vector.extract_strided_slice %29 {offsets = [0, 0], sizes = [8, 32], strides = [1, 1]} : vector<8x64xf32> to vector<8x32xf32>
    %31 = vector.extract_strided_slice %29 {offsets = [0, 32], sizes = [8, 32], strides = [1, 1]} : vector<8x64xf32> to vector<8x32xf32>
    %32 = vector.extract_strided_slice %21 {offsets = [0, 64], sizes = [8, 32], strides = [1, 1]} : vector<8x192xf32> to vector<8x32xf32>
    %33 = vector.extract_strided_slice %21 {offsets = [0, 160], sizes = [8, 32], strides = [1, 1]} : vector<8x192xf32> to vector<8x32xf32>
    %34 = arith.mulf %30, %33 : vector<8x32xf32>
    %35 = arith.addf %32, %34 : vector<8x32xf32>
    %36 = math.tanh %35 : vector<8x32xf32>
    %cst_14 = arith.constant 1.000000e+00 : f32
    %37 = vector.broadcast %cst_14 : f32 to vector<8x32xf32>
    %38 = arith.subf %37, %31 : vector<8x32xf32>
    %39 = arith.mulf %38, %36 : vector<8x32xf32>
    %40 = arith.mulf %31, %17 : vector<8x32xf32>
    %41 = arith.addf %39, %40 : vector<8x32xf32>
    %42 = tpu.concatenate %41, %19 in 1 : vector<8x32xf32>, vector<8x32xf32> -> vector<8x64xf32>
    %cst_15 = arith.constant dense<0.000000e+00> : vector<8x192xf32>
    %43 = tpu.matmul %42, %4, %cst_15 {dimension_numbers = #tpu.dot_dimension_numbers<[1], [0], [0], [1], [0, 0, 1, 1], [], []>} : vector<8x64xf32>, vector<64x192xf32>, vector<8x192xf32> -> vector<8x192xf32>
    %44 = vector.extract_strided_slice %43 {offsets = [0, 0], sizes = [8, 64], strides = [1, 1]} : vector<8x192xf32> to vector<8x64xf32>
    %45 = vector.extract_strided_slice %43 {offsets = [0, 96], sizes = [8, 64], strides = [1, 1]} : vector<8x192xf32> to vector<8x64xf32>
    %46 = arith.addf %44, %45 : vector<8x64xf32>
    %47 = vector.extract_strided_slice %6 {offsets = [0, 0], sizes = [1, 64], strides = [1, 1]} : vector<1x128xf32> to vector<1x64xf32>
    %48 = vector.broadcast %47 : vector<1x64xf32> to vector<8x64xf32>
    %49 = arith.addf %46, %48 : vector<8x64xf32>
    %50 = arith.negf %49 : vector<8x64xf32>
    %51 = math.exp %50 : vector<8x64xf32>
    %cst_16 = arith.constant 1.000000e+00 : f32
    %52 = vector.broadcast %cst_16 : f32 to vector<8x64xf32>
    %53 = arith.addf %52, %51 : vector<8x64xf32>
    %54 = arith.divf %52, %53 : vector<8x64xf32>
    %55 = vector.extract_strided_slice %54 {offsets = [0, 0], sizes = [8, 32], strides = [1, 1]} : vector<8x64xf32> to vector<8x32xf32>
    %56 = vector.extract_strided_slice %54 {offsets = [0, 32], sizes = [8, 32], strides = [1, 1]} : vector<8x64xf32> to vector<8x32xf32>
    %57 = vector.extract_strided_slice %43 {offsets = [0, 64], sizes = [8, 32], strides = [1, 1]} : vector<8x192xf32> to vector<8x32xf32>
    %58 = vector.extract_strided_slice %6 {offsets = [0, 64], sizes = [1, 32], strides = [1, 1]} : vector<1x128xf32> to vector<1x32xf32>
    %59 = vector.broadcast %58 : vector<1x32xf32> to vector<8x32xf32>
    %60 = arith.addf %57, %59 : vector<8x32xf32>
    %61 = vector.extract_strided_slice %43 {offsets = [0, 160], sizes = [8, 32], strides = [1, 1]} : vector<8x192xf32> to vector<8x32xf32>
    %62 = vector.extract_strided_slice %6 {offsets = [0, 96], sizes = [1, 32], strides = [1, 1]} : vector<1x128xf32> to vector<1x32xf32>
    %63 = vector.broadcast %62 : vector<1x32xf32> to vector<8x32xf32>
    %64 = arith.addf %61, %63 : vector<8x32xf32>
    %65 = arith.mulf %55, %64 : vector<8x32xf32>
    %66 = arith.addf %60, %65 : vector<8x32xf32>
    %67 = math.tanh %66 : vector<8x32xf32>
    %cst_17 = arith.constant 1.000000e+00 : f32
    %68 = vector.broadcast %cst_17 : f32 to vector<8x32xf32>
    %69 = arith.subf %68, %56 : vector<8x32xf32>
    %70 = arith.mulf %69, %67 : vector<8x32xf32>
    %71 = arith.mulf %56, %19 : vector<8x32xf32>
    %72 = arith.addf %70, %71 : vector<8x32xf32>
    %c0_18 = arith.constant 0 : index
    %c0_19 = arith.constant 0 : index
    %c0_20 = arith.constant 0 : index
    %73 = vector.load %arg5[%c0_18, %c0_19, %c0_20] : memref<2x8x32xf32, #tpu.memory_space<vmem>>, vector<1x8x32xf32>
    %74 = vector.shape_cast %73 : vector<1x8x32xf32> to vector<8x32xf32>
    %75 = vector.shape_cast %41 : vector<8x32xf32> to vector<1x8x32xf32>
    tpu.vector_store %arg5[%c0_18, %c0_19, %c0_20], %75 {strides = array<i32>} : memref<2x8x32xf32, #tpu.memory_space<vmem>>, vector<1x8x32xf32>,
    %c1_21 = arith.constant 1 : index
    %c0_22 = arith.constant 0 : index
    %c0_23 = arith.constant 0 : index
    %76 = vector.load %arg5[%c1_21, %c0_22, %c0_23] : memref<2x8x32xf32, #tpu.memory_space<vmem>>, vector<1x8x32xf32>
    %77 = vector.shape_cast %76 : vector<1x8x32xf32> to vector<8x32xf32>
    %78 = vector.shape_cast %72 : vector<8x32xf32> to vector<1x8x32xf32>
    tpu.vector_store %arg5[%c1_21, %c0_22, %c0_23], %78 {strides = array<i32>} : memref<2x8x32xf32, #tpu.memory_space<vmem>>, vector<1x8x32xf32>,
    %cst_24 = arith.constant dense<0.000000e+00> : vector<8x128xf32>
    %79 = tpu.matmul %72, %5, %cst_24 {dimension_numbers = #tpu.dot_dimension_numbers<[1], [0], [0], [1], [0, 0, 1, 1], [], []>} : vector<8x32xf32>, vector<32x128xf32>, vector<8x128xf32> -> vector<8x128xf32>
    %80 = vector.broadcast %7 : vector<1x128xf32> to vector<8x128xf32>
    %81 = arith.addf %79, %80 : vector<8x128xf32>
    %c0_25 = arith.constant 0 : index
    %c0_26 = arith.constant 0 : index
    %c0_27 = arith.constant 0 : index
    %82 = vector.load %arg4[%c0_25, %c0_26, %c0_27] : memref<1x8x128xf32, #tpu.memory_space<vmem>>, vector<1x8x128xf32>
    %83 = vector.shape_cast %82 : vector<1x8x128xf32> to vector<8x128xf32>
    %84 = vector.shape_cast %81 : vector<8x128xf32> to vector<1x8x128xf32>
    tpu.vector_store %arg4[%c0_25, %c0_26, %c0_27], %84 {strides = array<i32>} : memref<1x8x128xf32, #tpu.memory_space<vmem>>, vector<1x8x128xf32>,
    return
  }
  func.func @transform_0(%arg0: i32) -> (i32, i32, i32) {
    %c0_i32 = arith.constant 0 : i32
    %c0_i32_0 = arith.constant 0 : i32
    %c0_i32_1 = arith.constant 0 : i32
    %c0_i32_2 = arith.constant 0 : i32
    return %c0_i32, %c0_i32_0, %c0_i32_1 : i32, i32, i32
  }
  func.func @transform_1(%arg0: i32) -> (i32, i32, i32) {
    %c0_i32 = arith.constant 0 : i32
    %c0_i32_0 = arith.constant 0 : i32
    %c0_i32_1 = arith.constant 0 : i32
    %c0_i32_2 = arith.constant 0 : i32
    return %c0_i32, %c0_i32_0, %c0_i32_1 : i32, i32, i32
  }
  func.func @transform_2(%arg0: i32) -> (i32, i32) {
    %c0_i32 = arith.constant 0 : i32
    %c0_i32_0 = arith.constant 0 : i32
    %c0_i32_1 = arith.constant 0 : i32
    return %c0_i32, %c0_i32_0 : i32, i32
  }
  func.func @transform_3(%arg0: i32) -> (i32, i32, i32) {
    %c0_i32 = arith.constant 0 : i32
    %c0_i32_0 = arith.constant 0 : i32
    %c0_i32_1 = arith.constant 0 : i32
    return %arg0, %c0_i32, %c0_i32_0 : i32, i32, i32
  }
  func.func @transform_4(%arg0: i32) -> (i32, i32, i32) {
    %c0_i32 = arith.constant 0 : i32
    %c0_i32_0 = arith.constant 0 : i32
    %c0_i32_1 = arith.constant 0 : i32
    %c0_i32_2 = arith.constant 0 : i32
    return %c0_i32, %c0_i32_0, %c0_i32_1 : i32, i32, i32
  }
}

</mosaic_0001>

<llo_original>
// kernel: tpu_custom_call.1
$region0: #{tpu_custom_call.1}
  #allocation0 [shape = 'u32[]', space=smem, size = 0x4, offset = 0x4, fixed_abs, tag = 'smem constant byte address 0x4 - core index']
  #allocation1 [shape = 'u32[72,128]{1,0:T(1,128)}', space=vmem, size = 0x9000, scoped, tag = 'internal scratch']
  %s0 = inlined_call_operand.vmem [shape: s32[1,8,1], index: 0, kind: input, shape index: {}]
  %s1 = inlined_call_operand.hbm [shape: f32[2,8,32], index: 1, kind: input, shape index: {}]
  %s2 = inlined_call_operand.hbm [shape: f32[264,192], index: 2, kind: input, shape index: {}]
  %s3 = inlined_call_operand.hbm [shape: f32[1,8,128], index: 3, kind: output, shape index: {0}]
  %s4 = inlined_call_operand.hbm [shape: f32[2,8,32], index: 4, kind: output, shape index: {1}]
  %5 = xla_tuple %s3, %s4
  %s6 = sld [smem:[#allocation0]]
  $region42: #{tpu_custom_call.1} parent=0
    _
  %s8 = ssub.s32 1, %s6
  %s9 = scalar_select 0, %s8, %s6
  $region1: #{tpu_custom_call.1} parent=0
    #allocation2 [shape = 'u8[8192]{0}', space=vmem, size = 0x2000, scoped, tag = 'input window, operand 1, single buffered']
    #allocation3 [shape = 's32[1]{0}', space=sflag, size = 0x4, scoped, tag = 'scoped memory for tpu_custom_call.1']
    #allocation4 [shape = 's32[1]{0}', space=sflag, size = 0x4, scoped, tag = 'scoped memory for tpu_custom_call.1']
    #allocation5 [shape = 'u8[270336]{0}', space=vmem, size = 0x42000, scoped, tag = 'input window, operand 2, single buffered']
    #allocation6 [shape = 's32[1]{0}', space=sflag, size = 0x4, scoped, tag = 'scoped memory for tpu_custom_call.1']
    #allocation7 [shape = 'u8[4096]{0}', space=vmem, size = 0x1000, scoped, tag = 'output window, operand 0, single buffered']
    #allocation8 [shape = 'u8[8192]{0}', space=vmem, size = 0x2000, scoped, tag = 'output window, operand 1, single buffered']
    #allocation9 [shape = 's32[1]{0}', space=sflag, size = 0x4, scoped, tag = 'scoped memory for tpu_custom_call.1']
    %10 = vsyncpa [#allocation3], 0
    %11 = vsyncpa [#allocation6], 0
    %12 = vsyncpa [#allocation4], 0
    %13 = vsyncpa [#allocation9], 0
    // Predicated region
    $region2: #{tpu_custom_call.1} parent=1 // pred_check
      _
    $region3: #{tpu_custom_call.1} parent=1 // pred_check_branch
      %15 = sbr.rel (0) target = $region5
    $region4: #{tpu_custom_call.1} parent=1 // pred_region
      _
    $region5: #{tpu_custom_call.1} parent=1 // pred_fallthru
      _
    // Predicated region
    $region6: #{tpu_custom_call.1} parent=1 // pred_check
      _
    $region7: #{tpu_custom_call.1} parent=1 // pred_check_branch
      %17 = sbr.rel (0) target = $region9
    $region8: #{tpu_custom_call.1} parent=1 // pred_region
      %19 = vsyncadd [#allocation3], 0
      %s20 = sshll.u32 %s1, 4
      %s21 = int_to_ptr.hbm [resolvable:$true] %s20
      %s22 = sshll.u32 [#allocation2], 4
      %s23 = int_to_ptr.vmem [resolvable:$true] %s22
      %28 = dma.hbm_to_vmem [thread:$0]  %s21, 256, %s23, [#allocation3], 128, 128, 8
    $region9: #{tpu_custom_call.1} parent=1 // pred_fallthru
      _
    // Predicated region
    $region10: #{tpu_custom_call.1} parent=1 // pred_check
      _
    $region11: #{tpu_custom_call.1} parent=1 // pred_check_branch
      %30 = sbr.rel (0) target = $region13
    $region12: #{tpu_custom_call.1} parent=1 // pred_region
      %32 = vsyncadd [#allocation6], 0
      %s33 = sshll.u32 %s2, 4
      %s34 = int_to_ptr.hbm [resolvable:$true] %s33
      %s35 = sshll.u32 [#allocation5], 4
      %s36 = int_to_ptr.vmem [resolvable:$true] %s35
      %41 = dma.hbm_to_vmem [thread:$0]  %s34, 8448, %s36, [#allocation6], 256, 256, 16
    $region13: #{tpu_custom_call.1} parent=1 // pred_fallthru
      _
    // Predicated region
    $region14: #{tpu_custom_call.1} parent=1 // pred_check
      _
    $region15: #{tpu_custom_call.1} parent=1 // pred_check_branch
      %43 = sbr.rel (0) target = $region17
    $region16: #{tpu_custom_call.1} parent=1 // pred_region
      %45 = dma.done [#allocation3], 256
    $region17: #{tpu_custom_call.1} parent=1 // pred_fallthru
      _
    // Predicated region
    $region18: #{tpu_custom_call.1} parent=1 // pred_check
      _
    $region19: #{tpu_custom_call.1} parent=1 // pred_check_branch
      %47 = sbr.rel (0) target = $region21
    $region20: #{tpu_custom_call.1} parent=1 // pred_region
      %49 = dma.done [#allocation6], 8448
    $region21: #{tpu_custom_call.1} parent=1 // pred_fallthru
      _
    %p50 = scmp.eq.s32.totalorder 0, 0
    // Predicated region
    $region22: #{tpu_custom_call.1} parent=1 // pred_check
      %p51 = pneg %p50
    $region23: #{tpu_custom_call.1} parent=1 // pred_check_branch
      %53 = sbr.rel (%p51) target = $region25
    $region24: #{tpu_custom_call.1} parent=1 // pred_region
      %v54 = vld [vmem:[#allocation2] sm:$0xff]
      %v55 = vld [vmem:[#allocation2 + $0x8] sm:$0xff]
      %vm56 = vcmask 261120
      %57 = vst.msk [vmem:[#allocation8] sm:$0xff] %vm56, %v54
      %58 = vst.msk [vmem:[#allocation8 + $0x8] sm:$0xff] %vm56, %v55
    $region25: #{tpu_custom_call.1} parent=1 // pred_fallthru
      _
    %v59 = vld [vmem:[#allocation5] sm:$0xff]
    %v60 = vld [vmem:[#allocation5 + $0x8] sm:$0xff]
    %v61 = vld [vmem:[#allocation5 + $0x10] sm:$0xff]
    %v62 = vld [vmem:[#allocation5 + $0x18] sm:$0xff]
    %v63 = vld [vmem:[#allocation5 + $0x20] sm:$0xff]
    %v64 = vld [vmem:[#allocation5 + $0x28] sm:$0xff]
    %v65 = vld [vmem:[#allocation5 + $0x30] sm:$0xff]
    %v66 = vld [vmem:[#allocation5 + $0x38] sm:$0xff]
    %v67 = vld [vmem:[#allocation5 + $0x40] sm:$0xff]
    %v68 = vld [vmem:[#allocation5 + $0x48] sm:$0xff]
    %v69 = vld [vmem:[#allocation5 + $0x50] sm:$0xff]
    %v70 = vld [vmem:[#allocation5 + $0x58] sm:$0xff]
    %v71 = vld [vmem:[#allocation5 + $0x60] sm:$0xff]
    %v72 = vld [vmem:[#allocation5 + $0x68] sm:$0xff]
    %v73 = vld [vmem:[#allocation5 + $0x70] sm:$0xff]
    %v74 = vld [vmem:[#allocation5 + $0x78] sm:$0xff]
    %v75 = vld [vmem:[#allocation5 + $0x80] sm:$0xff]
    %v76 = vld [vmem:[#allocation5 + $0x88] sm:$0xff]
    %v77 = vld [vmem:[#allocation5 + $0x90] sm:$0xff]
    %v78 = vld [vmem:[#allocation5 + $0x98] sm:$0xff]
    %v79 = vld [vmem:[#allocation5 + $0xa0] sm:$0xff]
    %v80 = vld [vmem:[#allocation5 + $0xa8] sm:$0xff]
    %v81 = vld [vmem:[#allocation5 + $0xb0] sm:$0xff]
    %v82 = vld [vmem:[#allocation5 + $0xb8] sm:$0xff]
    %v83 = vld [vmem:[#allocation5 + $0xc0] sm:$0xff]
    %v84 = vld [vmem:[#allocation5 + $0xc8] sm:$0xff]
    %v85 = vld [vmem:[#allocation5 + $0xd0] sm:$0xff]
    %v86 = vld [vmem:[#allocation5 + $0xd8] sm:$0xff]
    %v87 = vld [vmem:[#allocation5 + $0xe0] sm:$0xff]
    %v88 = vld [vmem:[#allocation5 + $0xe8] sm:$0xff]
    %v89 = vld [vmem:[#allocation5 + $0xf0] sm:$0xff]
    %v90 = vld [vmem:[#allocation5 + $0xf8] sm:$0xff]
    %v91 = vld [vmem:[#allocation5 + $0x100] sm:$0xff]
    %v92 = vld [vmem:[#allocation5 + $0x108] sm:$0xff]
    %v93 = vld [vmem:[#allocation5 + $0x110] sm:$0xff]
    %v94 = vld [vmem:[#allocation5 + $0x118] sm:$0xff]
    %v95 = vld [vmem:[#allocation5 + $0x120] sm:$0xff]
    %v96 = vld [vmem:[#allocation5 + $0x128] sm:$0xff]
    %v97 = vld [vmem:[#allocation5 + $0x130] sm:$0xff]
    %v98 = vld [vmem:[#allocation5 + $0x138] sm:$0xff]
    %v99 = vld [vmem:[#allocation5 + $0x140] sm:$0xff]
    %v100 = vld [vmem:[#allocation5 + $0x148] sm:$0xff]
    %v101 = vld [vmem:[#allocation5 + $0x150] sm:$0xff]
    %v102 = vld [vmem:[#allocation5 + $0x158] sm:$0xff]
    %v103 = vld [vmem:[#allocation5 + $0x160] sm:$0xff]
    %v104 = vld [vmem:[#allocation5 + $0x168] sm:$0xff]
    %v105 = vld [vmem:[#allocation5 + $0x170] sm:$0xff]
    %v106 = vld [vmem:[#allocation5 + $0x178] sm:$0xff]
    %v107 = vld [vmem:[#allocation5 + $0x180] sm:$0xff]
    %v108 = vld [vmem:[#allocation5 + $0x188] sm:$0xff]
    %v109 = vld [vmem:[#allocation5 + $0x190] sm:$0xff]
    %v110 = vld [vmem:[#allocation5 + $0x198] sm:$0xff]
    %v111 = vld [vmem:[#allocation5 + $0x1a0] sm:$0xff]
    %v112 = vld [vmem:[#allocation5 + $0x1a8] sm:$0xff]
    %v113 = vld [vmem:[#allocation5 + $0x1b0] sm:$0xff]
    %v114 = vld [vmem:[#allocation5 + $0x1b8] sm:$0xff]
    %v115 = vld [vmem:[#allocation5 + $0x1c0] sm:$0xff]
    %v116 = vld [vmem:[#allocation5 + $0x1d0] sm:$0xff]
    %v117 = vld [vmem:[#allocation5 + $0x1e0] sm:$0xff]
    %v118 = vld [vmem:[#allocation5 + $0x1f0] sm:$0xff]
    %v119 = vld [vmem:[#allocation5 + $0x200] ss:$0 sm:$0xff]
    %v120 = vld [vmem:[#allocation5 + $0x201] ss:$0 sm:$0xff]
    %s121 = smul.u32 0, 8
    %s122 = scalar_lea.vmem %s0, %s121
    %v123 = vld [vmem:[%s122] sm:$0xff]
    %v124 = vlaneseq
    %v125 = vand.u32 %v124, 127
    %126 = vset.pattern.permute.xlu0 0
    %127 = vperm.xlu0 %126, %v123
    %v128 = vpop.permute.xlu0 %127
    %vm129 = vcmp.eq.s32.totalorder %v125, %v128
    %v130 = vsel %vm129, 1, 0
    %v131 = vcvt.s32.f32 %v130
    %v132 = vld [vmem:[#allocation8] sm:$0xff]
    %s133 = scalar_lea.vmem [#allocation8], 8
    %v134 = vld [vmem:[%s133] sm:$0xff]
    %vm135 = vcmask 261120
    %v137 = vsel %vm135, %v132, 0
    %139 = vmatpush.msra.mxu0 %v89
    %140 = vmatpush.msra.mxu0 %v87
    %141 = vmatpush.msra.mxu0 %v85
    %142 = vmatpush.msra.mxu0 %v83
    %143 = vmatpush.msra.mxu0 %v81
    %144 = vmatpush.msra.mxu0 %v79
    %145 = vmatpush.msra.mxu0 %v77
    %146 = vmatpush.msra.mxu0 %v75
    %147 = vmatpush.msra.mxu0 %v73
    %148 = vmatpush.msra.mxu0 %v71
    %149 = vmatpush.msra.mxu0 %v69
    %150 = vmatpush.msra.mxu0 %v67
    %151 = vmatpush.msra.mxu0 %v65
    %152 = vmatpush.msra.mxu0 %v63
    %153 = vmatpush.msra.mxu0 %v61
    %154 = vmatpush.msra.mxu0 %v59
    %155 = vmatmul.f32.gmra.mxu0 %v131
    %v156 = vpop.f32.mrf.mxu0
    %v157 = vadd.f32 0.0, %v156
    %158 = vdwg.mxu0
    %159 = vmatpush.msra.mxu0 0.0
    %160 = vmatpush.msra.mxu0 0.0
    %161 = vmatpush.msra.mxu0 0.0
    %162 = vmatpush.msra.mxu0 0.0
    %163 = vmatpush.msra.mxu0 0.0
    %164 = vmatpush.msra.mxu0 0.0
    %165 = vmatpush.msra.mxu0 0.0
    %166 = vmatpush.msra.mxu0 0.0
    %167 = vmatpush.msra.mxu0 0.0
    %168 = vmatpush.msra.mxu0 0.0
    %169 = vmatpush.msra.mxu0 0.0
    %170 = vmatpush.msra.mxu0 0.0
    %171 = vmatpush.msra.mxu0 %v97
    %172 = vmatpush.msra.mxu0 %v95
    %173 = vmatpush.msra.mxu0 %v93
    %174 = vmatpush.msra.mxu0 %v91
    %175 = vmatmul.f32.gmra.mxu0 %v137
    %v176 = vpop.f32.mrf.mxu0
    %v177 = vadd.f32 %v157, %v176
    %178 = vdwg.mxu0
    %179 = vmatpush.msra.mxu0 %v90
    %180 = vmatpush.msra.mxu0 %v88
    %181 = vmatpush.msra.mxu0 %v86
    %182 = vmatpush.msra.mxu0 %v84
    %183 = vmatpush.msra.mxu0 %v82
    %184 = vmatpush.msra.mxu0 %v80
    %185 = vmatpush.msra.mxu0 %v78
    %186 = vmatpush.msra.mxu0 %v76
    %187 = vmatpush.msra.mxu0 %v74
    %188 = vmatpush.msra.mxu0 %v72
    %189 = vmatpush.msra.mxu0 %v70
    %190 = vmatpush.msra.mxu0 %v68
    %191 = vmatpush.msra.mxu0 %v66
    %192 = vmatpush.msra.mxu0 %v64
    %193 = vmatpush.msra.mxu0 %v62
    %194 = vmatpush.msra.mxu0 %v60
    %195 = vmatmul.f32.gmra.mxu0 %v131
    %v196 = vpop.f32.mrf.mxu0
    %v197 = vadd.f32 0.0, %v196
    %198 = vdwg.mxu0
    %199 = vmatpush.msra.mxu0 0.0
    %200 = vmatpush.msra.mxu0 0.0
    %201 = vmatpush.msra.mxu0 0.0
    %202 = vmatpush.msra.mxu0 0.0
    %203 = vmatpush.msra.mxu0 0.0
    %204 = vmatpush.msra.mxu0 0.0
    %205 = vmatpush.msra.mxu0 0.0
    %206 = vmatpush.msra.mxu0 0.0
    %207 = vmatpush.msra.mxu0 0.0
    %208 = vmatpush.msra.mxu0 0.0
    %209 = vmatpush.msra.mxu0 0.0
    %210 = vmatpush.msra.mxu0 0.0
    %211 = vmatpush.msra.mxu0 %v98
    %212 = vmatpush.msra.mxu0 %v96
    %213 = vmatpush.msra.mxu0 %v94
    %214 = vmatpush.msra.mxu0 %v92
    %215 = vmatmul.f32.gmra.mxu0 %v137
    %v216 = vpop.f32.mrf.mxu0
    %v217 = vadd.f32 %v197, %v216
    %218 = vdwg.mxu0
    %221 = vrot.lane.b32.xlu0 %v177, 32
    %v222 = vpop.permute.xlu0 %221
    %223 = vrot.lane.b32.xlu0 %v217, 32
    %v224 = vpop.permute.xlu0 %223
    %v225 = vsel %vm135, %v222, %v224
    %v227 = vadd.f32 %v177, %v225
    %v228 = vxor.u32 %v227, 2147483648
    %v229 = vmul.f32 %v228, 1.442695
    %v230 = vpow.pop %v229
    %v231 = vadd.f32 %v230, 1.0
    %v232 = vrcp.pop %v231
    %v233 = vmul.f32 %v231, %v232
    %v234 = vsub.f32 1.0, %v233
    %v235 = vmul.f32 %v232, %v234
    %v236 = vadd.f32 %v232, %v235
    %vm237 = vweird.f32 %v231
    %vm238 = vweird.f32 %v232
    %vm239 = vmor %vm237, %vm238
    %v240 = vsel %vm239, %v232, %v236
    %v241 = vand.u32 2147483647, %v231
    %vm242 = vcmp.eq.f32.partialorder %v241, 8.507059e+37
    %v243 = vand.u32 %v231, 2147483648
    %v244 = vor.u32 1.1754944e-38, %v243
    %v245 = vsel %vm242, %v244, %v240
    %v246 = vmul.f32 1.0, %v245
    %247 = vrot.lane.b32.xlu0 %v217, 96
    %v248 = vpop.permute.xlu0 %247
    %v250 = vmul.f32 %v246, %v248
    %252 = vrot.lane.b32.xlu0 %v250, 64
    %v253 = vpop.permute.xlu0 %252
    %v255 = vadd.f32 %v177, %v253
    %v256 = vtanh.pop %v255
    %v257 = vsub.f32 1.0, %v246
    %259 = vrot.lane.b32.xlu0 %v256, 96
    %v260 = vpop.permute.xlu0 %259
    %v262 = vmul.f32 %v257, %v260
    %263 = vrot.lane.b32.xlu0 %v132, 32
    %v264 = vpop.permute.xlu0 %263
    %v266 = vmul.f32 %v246, %v264
    %v267 = vadd.f32 %v262, %v266
    %269 = vrot.lane.b32.xlu0 %v267, 96
    %v270 = vpop.permute.xlu0 %269
    %273 = vrot.lane.b32.xlu0 %v134, 32
    %v274 = vpop.permute.xlu0 %273
    %v276 = vsel %vm135, %v270, %v274
    %vm277 = vcmask 523264
    %v279 = vsel %vm277, %v276, 0
    %281 = vmatpush.msra.mxu0 0.0
    %282 = vmatpush.msra.mxu0 0.0
    %283 = vmatpush.msra.mxu0 0.0
    %284 = vmatpush.msra.mxu0 0.0
    %285 = vmatpush.msra.mxu0 0.0
    %286 = vmatpush.msra.mxu0 0.0
    %287 = vmatpush.msra.mxu0 0.0
    %288 = vmatpush.msra.mxu0 0.0
    %289 = vmatpush.msra.mxu0 %v113
    %290 = vmatpush.msra.mxu0 %v111
    %291 = vmatpush.msra.mxu0 %v109
    %292 = vmatpush.msra.mxu0 %v107
    %293 = vmatpush.msra.mxu0 %v105
    %294 = vmatpush.msra.mxu0 %v103
    %295 = vmatpush.msra.mxu0 %v101
    %296 = vmatpush.msra.mxu0 %v99
    %297 = vmatmul.f32.gmra.mxu0 %v279
    %v298 = vpop.f32.mrf.mxu0
    %v299 = vadd.f32 0.0, %v298
    %300 = vdwg.mxu0
    %301 = vmatpush.msra.mxu0 0.0
    %302 = vmatpush.msra.mxu0 0.0
    %303 = vmatpush.msra.mxu0 0.0
    %304 = vmatpush.msra.mxu0 0.0
    %305 = vmatpush.msra.mxu0 0.0
    %306 = vmatpush.msra.mxu0 0.0
    %307 = vmatpush.msra.mxu0 0.0
    %308 = vmatpush.msra.mxu0 0.0
    %309 = vmatpush.msra.mxu0 %v114
    %310 = vmatpush.msra.mxu0 %v112
    %311 = vmatpush.msra.mxu0 %v110
    %312 = vmatpush.msra.mxu0 %v108
    %313 = vmatpush.msra.mxu0 %v106
    %314 = vmatpush.msra.mxu0 %v104
    %315 = vmatpush.msra.mxu0 %v102
    %316 = vmatpush.msra.mxu0 %v100
    %317 = vmatmul.f32.gmra.mxu0 %v279
    %v318 = vpop.f32.mrf.mxu0
    %v319 = vadd.f32 0.0, %v318
    %320 = vdwg.mxu0
    %323 = vrot.lane.b32.xlu0 %v299, 32
    %v324 = vpop.permute.xlu0 %323
    %325 = vrot.lane.b32.xlu0 %v319, 32
    %v326 = vpop.permute.xlu0 %325
    %v327 = vsel %vm135, %v324, %v326
    %v329 = vadd.f32 %v299, %v327
    %v330 = vadd.f32 %v329, %v119
    %v331 = vxor.u32 %v330, 2147483648
    %v332 = vmul.f32 %v331, 1.442695
    %v333 = vpow.pop %v332
    %v334 = vadd.f32 %v333, 1.0
    %v335 = vrcp.pop %v334
    %v336 = vmul.f32 %v334, %v335
    %v337 = vsub.f32 1.0, %v336
    %v338 = vmul.f32 %v335, %v337
    %v339 = vadd.f32 %v335, %v338
    %vm340 = vweird.f32 %v334
    %vm341 = vweird.f32 %v335
    %vm342 = vmor %vm340, %vm341
    %v343 = vsel %vm342, %v335, %v339
    %v344 = vand.u32 2147483647, %v334
    %vm345 = vcmp.eq.f32.partialorder %v344, 8.507059e+37
    %v346 = vand.u32 %v334, 2147483648
    %v347 = vor.u32 1.1754944e-38, %v346
    %v348 = vsel %vm345, %v347, %v343
    %v349 = vmul.f32 1.0, %v348
    %v350 = vadd.f32 %v299, %v119
    %352 = vrot.lane.b32.xlu0 %v119, 64
    %v353 = vpop.permute.xlu0 %352
    %v355 = vadd.f32 %v319, %v353
    %357 = vrot.lane.b32.xlu0 %v355, 96
    %v358 = vpop.permute.xlu0 %357
    %v360 = vmul.f32 %v349, %v358
    %362 = vrot.lane.b32.xlu0 %v360, 64
    %v363 = vpop.permute.xlu0 %362
    %v365 = vadd.f32 %v350, %v363
    %v366 = vtanh.pop %v365
    %v367 = vsub.f32 1.0, %v349
    %369 = vrot.lane.b32.xlu0 %v366, 96
    %v370 = vpop.permute.xlu0 %369
    %v372 = vmul.f32 %v367, %v370
    %v373 = vmul.f32 %v349, %v274
    %v374 = vadd.f32 %v372, %v373
    %375 = vst.msk [vmem:[#allocation8] sm:$0xff] %vm135, %v270
    %377 = vrot.lane.b32.xlu0 %v374, 96
    %v378 = vpop.permute.xlu0 %377
    %380 = vst.msk [vmem:[%s133] sm:$0xff] %vm135, %v378
    %v381 = vsel %vm135, %v378, 0
    %383 = vmatpush.msra.mxu0 0.0
    %384 = vmatpush.msra.mxu0 0.0
    %385 = vmatpush.msra.mxu0 0.0
    %386 = vmatpush.msra.mxu0 0.0
    %387 = vmatpush.msra.mxu0 0.0
    %388 = vmatpush.msra.mxu0 0.0
    %389 = vmatpush.msra.mxu0 0.0
    %390 = vmatpush.msra.mxu0 0.0
    %391 = vmatpush.msra.mxu0 0.0
    %392 = vmatpush.msra.mxu0 0.0
    %393 = vmatpush.msra.mxu0 0.0
    %394 = vmatpush.msra.mxu0 0.0
    %395 = vmatpush.msra.mxu0 %v118
    %396 = vmatpush.msra.mxu0 %v117
    %397 = vmatpush.msra.mxu0 %v116
    %398 = vmatpush.msra.mxu0 %v115
    %399 = vmatmul.f32.gmra.mxu0 %v381
    %v400 = vpop.f32.mrf.mxu0
    %v401 = vadd.f32 %v120, %v400
    %402 = vdwg.mxu0
    %403 = vst [vmem:[#allocation7] sm:$0xff] %v401
    // Predicated region
    $region26: #{tpu_custom_call.1} parent=1 // pred_check
      _
    $region27: #{tpu_custom_call.1} parent=1 // pred_check_branch
      %405 = sbr.rel (0) target = $region29
    $region28: #{tpu_custom_call.1} parent=1 // pred_region
      %407 = vsyncadd [#allocation4], 0
      %s409 = sshll.u32 [#allocation7], 4
      %s410 = int_to_ptr.vmem [resolvable:$true] %s409
      %s411 = sshll.u32 %s3, 4
      %s412 = int_to_ptr.hbm [resolvable:$true] %s411
      %414 = dma.vmem_to_hbm [thread:$0]  %s410, 128, %s412, [#allocation4]
    $region29: #{tpu_custom_call.1} parent=1 // pred_fallthru
      _
    // Predicated region
    $region30: #{tpu_custom_call.1} parent=1 // pred_check
      _
    $region31: #{tpu_custom_call.1} parent=1 // pred_check_branch
      %416 = sbr.rel (0) target = $region33
    $region32: #{tpu_custom_call.1} parent=1 // pred_region
      %418 = vsyncadd [#allocation9], 0
      %s419 = sshll.u32 [#allocation8], 4
      %s420 = int_to_ptr.vmem [resolvable:$true] %s419
      %s421 = sshll.u32 %s4, 4
      %s422 = int_to_ptr.hbm [resolvable:$true] %s421
      %427 = dma.vmem_to_hbm [thread:$0]  %s420, 256, %s422, [#allocation9], 128, 128, 8
    $region33: #{tpu_custom_call.1} parent=1 // pred_fallthru
      _
    // Predicated region
    $region34: #{tpu_custom_call.1} parent=1 // pred_check
      _
    $region35: #{tpu_custom_call.1} parent=1 // pred_check_branch
      %429 = sbr.rel (0) target = $region37
    $region36: #{tpu_custom_call.1} parent=1 // pred_region
      %431 = dma.done [#allocation4], 128
    $region37: #{tpu_custom_call.1} parent=1 // pred_fallthru
      _
    // Predicated region
    $region38: #{tpu_custom_call.1} parent=1 // pred_check
      _
    $region39: #{tpu_custom_call.1} parent=1 // pred_check_branch
      %433 = sbr.rel (0) target = $region41
    $region40: #{tpu_custom_call.1} parent=1 // pred_region
      %435 = dma.done [#allocation9], 256
    $region41: #{tpu_custom_call.1} parent=1 // pred_fallthru
      _
    %436 = vsyncpa [#allocation3], 1
    %437 = vsyncpa [#allocation6], 1
    %438 = vsyncpa [#allocation4], 1
    %439 = vsyncpa [#allocation9], 1

</llo_original>
